<compile_context>
chip_gen: v7x
topology: tpu7x:2x2x1
jax: 0.10.0
libtpu: 0.0.40
codegen_flags: <defaults>
</compile_context>

<pallas_src>
import math

import jax
import jax.numpy as jnp
from jax.experimental import pallas as pl
from jax.experimental.pallas import tpu as pltpu


_VMEM_LIMIT = 48 * 1024 * 1024        # <= v7x's 64 MiB per-TC VMEM; ample headroom on v5e/v6e
_RESIDENT_W_BYTES = 4 * 1024 * 1024   # fast-path threshold for a VMEM-resident weight


def _round_up(x, m):
    return ((x + m - 1) // m) * m


def _cdiv(a, b):
    return -(-a // b)


def _pick_tile(dim, max_tile, align):
    """Largest tile <= max_tile that is `align`-aligned and minimizes padding."""
    padded = _round_up(dim, align)
    n_blocks = max(1, _cdiv(padded, max_tile))
    return _round_up(_cdiv(padded, n_blocks), align)


# ------------------------------- kernels -------------------------------------


def _linear_kernel(x_ref, w_ref, b_ref, o_ref, acc_ref):
    """3-D (M, N, K) grid. f32 accumulator is seeded with the bias at k == 0."""
    k = pl.program_id(2)

    @pl.when(k == 0)
    def _():
        # Fold the bias into the accumulator init: no zero-fill, no epilogue add.
        acc_ref[...] = jnp.broadcast_to(b_ref[...], acc_ref.shape)

    acc_ref[...] += jnp.dot(
        x_ref[...], w_ref[...], preferred_element_type=jnp.float32
    )

    @pl.when(k == pl.num_programs(2) - 1)
    def _():
        o_ref[...] = acc_ref[...].astype(o_ref.dtype)


def _linear_resident_w_kernel(x_ref, w_ref, b_ref, o_ref):
    """1-D grid over row blocks; the whole (padded) weight stays resident in VMEM."""
    acc = jnp.dot(x_ref[...], w_ref[...], preferred_element_type=jnp.float32)
    o_ref[...] = (acc + b_ref[...]).astype(o_ref.dtype)


# ------------------------------- wrapper --------------------------------------


def pallas_linear(x, weight, bias, *, tm=512, tn=1024, tk=1024,
                  compute_dtype=jnp.bfloat16):
    """y = x @ W + b.  x: [..., Din], weight: [Din, Dout], bias: [Dout].

    bf16 compute (MXU-native everywhere) with f32 accumulation by default;
    pass compute_dtype=None to keep the matmul in f32.
    """
    orig_shape = x.shape
    Din = orig_shape[-1]
    Dout = weight.shape[1]
    out_dtype = x.dtype

    x2 = x.reshape(-1, Din)
    N = x2.shape[0]

    if compute_dtype is not None:
        x2 = x2.astype(compute_dtype)
        weight = weight.astype(compute_dtype)
    itemsize = jnp.dtype(x2.dtype).itemsize
    out_itemsize = jnp.dtype(out_dtype).itemsize
    # Sublane packing: bf16 -> 16 rows, int8/fp8 -> 32, f32 -> 8.
    sub = 16 if itemsize == 2 else (32 if itemsize == 1 else 8)

    # ---- tile selection: aligned, clamped, padding-minimizing ----
    N_sub = _round_up(N, sub)
    tm_e = _pick_tile(N, tm, sub)
    # Keep >=2 row blocks whenever possible so v7x's second TensorCore gets work.
    if _cdiv(N_sub, tm_e) < 2 and N_sub >= 2 * sub:
        tm_e = _round_up(N_sub // 2, sub)
    tn_e = _pick_tile(Dout, tn, 128)
    tk_e = _pick_tile(Din, tk, 128)

    Np = _round_up(N, tm_e)
    Dinp = _round_up(Din, tk_e)
    Doutp = _round_up(Dout, tn_e)

    # TODO(synk): in a real model, cast/pad W and b once at init and cache them
    # instead of re-materializing per call (x padding could use a ragged last block).
    if Np != N or Dinp != Din:
        x2 = jnp.pad(x2, ((0, Np - N), (0, Dinp - Din)))
    if Dinp != Din or Doutp != Dout:
        weight = jnp.pad(weight, ((0, Dinp - Din), (0, Doutp - Dout)))
    b2 = bias.astype(jnp.float32)
    if Doutp != Dout:
        b2 = jnp.pad(b2, (0, Doutp - Dout))
    b2 = b2.reshape(1, Doutp)

    w_bytes = Dinp * Doutp * itemsize
    # Footprint if W stays resident (inputs/outputs double-buffered, W + bias once).
    fast_footprint = (
        2 * (tm_e * Dinp * itemsize + tm_e * Doutp * out_itemsize)
        + 2 * w_bytes
        + 4 * Doutp
    )

    if w_bytes <= _RESIDENT_W_BYTES and fast_footprint <= _VMEM_LIMIT - (8 << 20):
        # -------- fast path: weight resident in VMEM, no K axis / scratch --------
        out_padded = pl.pallas_call(
            _linear_resident_w_kernel,
            out_shape=jax.ShapeDtypeStruct((Np, Doutp), out_dtype),
            grid_spec=pltpu.PrefetchScalarGridSpec(
                num_scalar_prefetch=0,
                grid=(Np // tm_e,),
                in_specs=[
                    pl.BlockSpec((tm_e, Dinp), lambda i: (i, 0)),     # x row block
                    pl.BlockSpec((Dinp, Doutp), lambda i: (0, 0)),    # W resident
                    pl.BlockSpec((1, Doutp), lambda i: (0, 0)),       # bias resident
                ],
                out_specs=pl.BlockSpec((tm_e, Doutp), lambda i: (i, 0)),
            ),
            compiler_params=pltpu.CompilerParams(
                dimension_semantics=("parallel",),
                vmem_limit_bytes=_VMEM_LIMIT,
            ),
        )(x2, weight, b2)
    else:
        # -------- general path: 3-D (M, N, K) grid with f32 accumulator --------
        grid = (Np // tm_e, Doutp // tn_e, Dinp // tk_e)
        k_steps = grid[2]
        if k_steps >= 4:
            # Deeper prefetch hides HBM latency when each K step is a multi-MiB DMA.
            x_spec = pl.BlockSpec((tm_e, tk_e), lambda i, j, k: (i, k),
                                  pipeline_mode=pl.Buffered(3))
            w_spec = pl.BlockSpec((tk_e, tn_e), lambda i, j, k: (k, j),
                                  pipeline_mode=pl.Buffered(3))
        else:
            x_spec = pl.BlockSpec((tm_e, tk_e), lambda i, j, k: (i, k))
            w_spec = pl.BlockSpec((tk_e, tn_e), lambda i, j, k: (k, j))

        out_padded = pl.pallas_call(
            _linear_kernel,
            out_shape=jax.ShapeDtypeStruct((Np, Doutp), out_dtype),
            grid_spec=pltpu.PrefetchScalarGridSpec(
                num_scalar_prefetch=0,
                grid=grid,
                in_specs=[
                    x_spec,
                    w_spec,
                    pl.BlockSpec((1, tn_e), lambda i, j, k: (0, j)),  # bias N tile
                ],
                out_specs=pl.BlockSpec((tm_e, tn_e), lambda i, j, k: (i, j)),
                scratch_shapes=[pltpu.VMEM((tm_e, tn_e), jnp.float32)],
            ),
            compiler_params=pltpu.CompilerParams(
                dimension_semantics=("parallel", "parallel", "arbitrary"),
                vmem_limit_bytes=_VMEM_LIMIT,
            ),
        )(x2, weight, b2)

    out = out_padded[:N, :Dout]
    return out.reshape(*orig_shape[:-1], Dout)


# ------------------------------- init / test ----------------------------------


def init_params(key, in_dim, out_dim):
    # PyG 'kaiming_uniform' with a=sqrt(5), fan=in_dim -> U(-1/sqrt(fan), 1/sqrt(fan))
    bound = 1.0 / math.sqrt(in_dim)
    w = jax.random.uniform(key, (in_dim, out_dim), jnp.float32, -bound, bound)
    b = jnp.zeros((out_dim,), jnp.float32)  # bias_initializer='zeros'
    return w, b


def _ref_linear(x, w, b, compute_dtype=jnp.bfloat16):
    """Reference with the same input dtypes / f32 accumulation as the kernel."""
    xc = x.astype(compute_dtype) if compute_dtype is not None else x
    wc = w.astype(compute_dtype) if compute_dtype is not None else w
    y = jnp.dot(xc, wc, preferred_element_type=jnp.float32)
    return (y + b[None, :]).astype(x.dtype)


if __name__ == "__main__":
    key = jax.random.PRNGKey(0)
    k1, k2, k3, k4, k5, k6 = jax.random.split(key, 6)

    # 1) Small, non-aligned shapes: padding + resident-weight fast path.
    N, in_dim, out_dim = 10, 48, 72
    x = jax.random.normal(k1, (N, in_dim), jnp.float32)
    w, b = init_params(k2, in_dim, out_dim)
    y = pallas_linear(x, w, b)
    jax.block_until_ready(y)
    assert y.shape == (N, out_dim)
    assert jnp.allclose(y, _ref_linear(x, w, b), atol=1e-2, rtol=1e-2)

    # 2) Medium shape: multi-row-block fast path (weight fits in VMEM).
    N2, in2, out2 = 256, 1024, 384
    x2 = jax.random.normal(k3, (N2, in2), jnp.float32)
    w2, b2 = init_params(k4, in2, out2)
    y2 = pallas_linear(x2, w2, b2)
    jax.block_until_ready(y2)
    assert y2.shape == (N2, out2)
    assert jnp.allclose(y2, _ref_linear(x2, w2, b2), atol=1e-2, rtol=1e-2)

    # 3) Larger weight: exercises the 3-D (M, N, K) grid with the f32 accumulator.
    N3, in3, out3 = 128, 2048, 2048
    x3 = jax.random.normal(k5, (N3, in3), jnp.float32)
    w3, b3 = init_params(k6, in3, out3)
    y3 = pallas_linear(x3, w3, b3)
    jax.block_until_ready(y3)
    assert y3.shape == (N3, out3)
    assert jnp.allclose(y3, _ref_linear(x3, w3, b3), atol=1e-2, rtol=1e-2)

    print("KERNEL_OK")
</pallas_src>

<mosaic_0001>
module attributes {stable_mosaic.version = 11 : i64} {
  func.func @_linear_resident_w_kernel(%arg0: i32, %arg1: memref<16x128xbf16, #tpu.memory_space<vmem>>, %arg2: memref<128x128xbf16, #tpu.memory_space<vmem>>, %arg3: memref<1x128xf32, #tpu.memory_space<vmem>>, %arg4: memref<16x128xf32, #tpu.memory_space<vmem>>) attributes {dimension_semantics = [#tpu.dimension_semantics<parallel>], iteration_bounds = array<i64: 1>, scalar_prefetch = 0 : i64, scratch_operands = 0 : i64, tpu.core_type = #tpu.core_type<tc>, window_params = [{transform_indices = @transform_0, window_bounds = array<i64: 16, 128>}, {pipeline_mode = #tpu.pipeline_mode<synchronous>, transform_indices = @transform_1, window_bounds = array<i64: 128, 128>}, {pipeline_mode = #tpu.pipeline_mode<synchronous>, transform_indices = @transform_2, window_bounds = array<i64: 1, 128>}, {transform_indices = @transform_3, window_bounds = array<i64: 16, 128>}]} {
    %c0 = arith.constant 0 : index
    %c0_0 = arith.constant 0 : index
    %0 = vector.load %arg1[%c0, %c0_0] : memref<16x128xbf16, #tpu.memory_space<vmem>>, vector<16x128xbf16>
    %c0_1 = arith.constant 0 : index
    %c0_2 = arith.constant 0 : index
    %1 = vector.load %arg2[%c0_1, %c0_2] : memref<128x128xbf16, #tpu.memory_space<vmem>>, vector<128x128xbf16>
    %cst = arith.constant dense<0.000000e+00> : vector<16x128xf32>
    %2 = tpu.matmul %0, %1, %cst {dimension_numbers = #tpu.dot_dimension_numbers<[1], [0], [0], [1], [0, 0, 1, 1], [], []>} : vector<16x128xbf16>, vector<128x128xbf16>, vector<16x128xf32> -> vector<16x128xf32>
    %c0_3 = arith.constant 0 : index
    %c0_4 = arith.constant 0 : index
    %3 = vector.load %arg3[%c0_3, %c0_4] : memref<1x128xf32, #tpu.memory_space<vmem>>, vector<1x128xf32>
    %4 = vector.broadcast %3 : vector<1x128xf32> to vector<16x128xf32>
    %5 = arith.addf %2, %4 : vector<16x128xf32>
    %c0_5 = arith.constant 0 : index
    %c0_6 = arith.constant 0 : index
    %6 = vector.load %arg4[%c0_5, %c0_6] : memref<16x128xf32, #tpu.memory_space<vmem>>, vector<16x128xf32>
    tpu.vector_store %arg4[%c0_5, %c0_6], %5 {strides = array<i32>} : memref<16x128xf32, #tpu.memory_space<vmem>>, vector<16x128xf32>,
    return
  }
  func.func @transform_0(%arg0: i32) -> (i32, i32) {
    %c0_i32 = arith.constant 0 : i32
    %c0_i32_0 = arith.constant 0 : i32
    return %arg0, %c0_i32 : i32, i32
  }
  func.func @transform_1(%arg0: i32) -> (i32, i32) {
    %c0_i32 = arith.constant 0 : i32
    %c0_i32_0 = arith.constant 0 : i32
    %c0_i32_1 = arith.constant 0 : i32
    return %c0_i32, %c0_i32_0 : i32, i32
  }
  func.func @transform_2(%arg0: i32) -> (i32, i32) {
    %c0_i32 = arith.constant 0 : i32
    %c0_i32_0 = arith.constant 0 : i32
    %c0_i32_1 = arith.constant 0 : i32
    return %c0_i32, %c0_i32_0 : i32, i32
  }
  func.func @transform_3(%arg0: i32) -> (i32, i32) {
    %c0_i32 = arith.constant 0 : i32
    %c0_i32_0 = arith.constant 0 : i32
    return %arg0, %c0_i32 : i32, i32
  }
}

</mosaic_0001>

<llo_original>
// kernel: tpu_custom_call.1
$region0: #{tpu_custom_call.1}
  #allocation0 [shape = 'u32[]', space=smem, size = 0x4, offset = 0x4, fixed_abs, tag = 'smem constant byte address 0x4 - core index']
  #allocation1 [shape = 'u32[144,128]{1,0:T(1,128)}', space=vmem, size = 0x12000, scoped, tag = 'internal scratch']
  %s0 = inlined_call_operand.hbm [shape: bf16[16,128], index: 0, kind: input, shape index: {}]
  %s1 = inlined_call_operand.hbm [shape: bf16[128,128], index: 1, kind: input, shape index: {}]
  %s2 = inlined_call_operand.vmem [shape: f32[1,128], index: 2, kind: input, shape index: {}]
  %s3 = inlined_call_operand.hbm [shape: f32[16,128], index: 3, kind: output, shape index: {}]
  %s4 = sld [smem:[#allocation0]]
  $region30: #{tpu_custom_call.1} parent=0
    _
  %s6 = ssub.s32 1, %s4
  %s7 = scalar_select 0, %s6, %s4
  $region1: #{tpu_custom_call.1} parent=0
    #allocation2 [shape = 'u8[4096]{0}', space=vmem, size = 0x1000, scoped, tag = 'input window, operand 0, single buffered']
    #allocation3 [shape = 's32[1]{0}', space=sflag, size = 0x4, scoped, tag = 'scoped memory for tpu_custom_call.1']
    #allocation4 [shape = 's32[1]{0}', space=sflag, size = 0x4, scoped, tag = 'scoped memory for tpu_custom_call.1']
    #allocation5 [shape = 'u8[32768]{0}', space=vmem, size = 0x8000, scoped, tag = 'input window, operand 1, single buffered']
    #allocation6 [shape = 's32[1]{0}', space=sflag, size = 0x4, scoped, tag = 'scoped memory for tpu_custom_call.1']
    #allocation7 [shape = 'u8[8192]{0}', space=vmem, size = 0x2000, scoped, tag = 'output window, operand 0, single buffered']
    %8 = vsyncpa [#allocation3], 0
    %9 = vsyncpa [#allocation6], 0
    %10 = vsyncpa [#allocation4], 0
    // Predicated region
    $region2: #{tpu_custom_call.1} parent=1 // pred_check
      _
    $region3: #{tpu_custom_call.1} parent=1 // pred_check_branch
      %12 = sbr.rel (0) target = $region5
    $region4: #{tpu_custom_call.1} parent=1 // pred_region
      %s14 = ssub.s32 128, 128
      %15 = vsyncadd [#allocation3], %s14
      %s16 = sshll.u32 [#allocation2], 4
      %s17 = int_to_ptr.vmem [resolvable:$true] %s16
      %22 = dma.hbm_to_vmem [thread:$0]  %s0, 128, %s17, [#allocation3], 64, 64, 4
    $region5: #{tpu_custom_call.1} parent=1 // pred_fallthru
      _
    // Predicated region
    $region6: #{tpu_custom_call.1} parent=1 // pred_check
      _
    $region7: #{tpu_custom_call.1} parent=1 // pred_check_branch
      %24 = sbr.rel (0) target = $region9
    $region8: #{tpu_custom_call.1} parent=1 // pred_region
      %s26 = ssub.s32 1024, 1024
      %27 = vsyncadd [#allocation6], %s26
      %s28 = sshll.u32 [#allocation5], 4
      %s29 = int_to_ptr.vmem [resolvable:$true] %s28
      %34 = dma.hbm_to_vmem [thread:$0]  %s1, 1024, %s29, [#allocation6], 64, 64, 4
    $region9: #{tpu_custom_call.1} parent=1 // pred_fallthru
      _
    // Predicated region
    $region10: #{tpu_custom_call.1} parent=1 // pred_check
      _
    $region11: #{tpu_custom_call.1} parent=1 // pred_check_branch
      %36 = sbr.rel (0) target = $region13
    $region12: #{tpu_custom_call.1} parent=1 // pred_region
      _
    $region13: #{tpu_custom_call.1} parent=1 // pred_fallthru
      _
    // Predicated region
    $region14: #{tpu_custom_call.1} parent=1 // pred_check
      _
    $region15: #{tpu_custom_call.1} parent=1 // pred_check_branch
      %38 = sbr.rel (0) target = $region17
    $region16: #{tpu_custom_call.1} parent=1 // pred_region
      %39 = dma.done [#allocation3], 128
    $region17: #{tpu_custom_call.1} parent=1 // pred_fallthru
      _
    // Predicated region
    $region18: #{tpu_custom_call.1} parent=1 // pred_check
      _
    $region19: #{tpu_custom_call.1} parent=1 // pred_check_branch
      %41 = sbr.rel (0) target = $region21
    $region20: #{tpu_custom_call.1} parent=1 // pred_region
      %42 = dma.done [#allocation6], 1024
    $region21: #{tpu_custom_call.1} parent=1 // pred_fallthru
      _
    %v44 = vld [vmem:[#allocation2] sm:$0xf]
    %v45 = vld [vmem:[#allocation2 + $0x4] sm:$0xf]
    %v46 = vld [vmem:[#allocation5] sm:$0xf]
    %v47 = vld [vmem:[#allocation5 + $0x4] sm:$0xf]
    %v48 = vld [vmem:[#allocation5 + $0x8] sm:$0xf]
    %v49 = vld [vmem:[#allocation5 + $0xc] sm:$0xf]
    %v50 = vld [vmem:[#allocation5 + $0x10] sm:$0xf]
    %v51 = vld [vmem:[#allocation5 + $0x14] sm:$0xf]
    %v52 = vld [vmem:[#allocation5 + $0x18] sm:$0xf]
    %v53 = vld [vmem:[#allocation5 + $0x1c] sm:$0xf]
    %v54 = vld [vmem:[#allocation5 + $0x20] sm:$0xf]
    %v55 = vld [vmem:[#allocation5 + $0x24] sm:$0xf]
    %v56 = vld [vmem:[#allocation5 + $0x28] sm:$0xf]
    %v57 = vld [vmem:[#allocation5 + $0x2c] sm:$0xf]
    %v58 = vld [vmem:[#allocation5 + $0x30] sm:$0xf]
    %v59 = vld [vmem:[#allocation5 + $0x34] sm:$0xf]
    %v60 = vld [vmem:[#allocation5 + $0x38] sm:$0xf]
    %v61 = vld [vmem:[#allocation5 + $0x3c] sm:$0xf]
    %v62 = vld [vmem:[%s2] sm:$0x1]
    %v64 = vlaneseq
    %v65 = vshrl.u32 %v64, 7
    %v66 = vsub.s32 0, %v65
    %v67 = vrot.slane %v62, %v66
    %v71 = vunpack.c.l.b16 %v44
    %v72 = vunpack.c.l.b16 %v45
    %v73 = vpack.c.b16 %v72, %v71
    %v91 = vunpack.c.l.b16 %v46
    %v92 = vunpack.c.l.b16 %v47
    %v93 = vunpack.c.l.b16 %v48
    %v94 = vunpack.c.l.b16 %v49
    %v95 = vunpack.c.l.b16 %v50
    %v96 = vunpack.c.l.b16 %v51
    %v97 = vunpack.c.l.b16 %v52
    %v98 = vunpack.c.l.b16 %v53
    %v99 = vunpack.c.l.b16 %v54
    %v100 = vunpack.c.l.b16 %v55
    %v101 = vunpack.c.l.b16 %v56
    %v102 = vunpack.c.l.b16 %v57
    %v103 = vunpack.c.l.b16 %v58
    %v104 = vunpack.c.l.b16 %v59
    %v105 = vunpack.c.l.b16 %v60
    %v106 = vunpack.c.l.b16 %v61
    %v107 = vpack.c.b16 %v92, %v91
    %v108 = vpack.c.b16 %v94, %v93
    %v109 = vpack.c.b16 %v96, %v95
    %v110 = vpack.c.b16 %v98, %v97
    %v111 = vpack.c.b16 %v100, %v99
    %v112 = vpack.c.b16 %v102, %v101
    %v113 = vpack.c.b16 %v104, %v103
    %v114 = vpack.c.b16 %v106, %v105
    %123 = vmatprep.subr.bf16.mxu0 0
    %124 = vmatpush1.bf16.msra.mxu0 %v107
    %125 = vmatprep.subr.bf16.mxu0 0
    %126 = vmatpush1.bf16.msra.mxu0 %v108
    %127 = vmatprep.subr.bf16.mxu0 0
    %128 = vmatpush1.bf16.msra.mxu0 %v109
    %129 = vmatprep.subr.bf16.mxu0 0
    %130 = vmatpush1.bf16.msra.mxu0 %v110
    %131 = vmatprep.subr.bf16.mxu0 0
    %132 = vmatpush1.bf16.msra.mxu0 %v111
    %133 = vmatprep.subr.bf16.mxu0 0
    %134 = vmatpush1.bf16.msra.mxu0 %v112
    %135 = vmatprep.subr.bf16.mxu0 0
    %136 = vmatpush1.bf16.msra.mxu0 %v113
    %137 = vmatprep.subr.bf16.mxu0 0
    %138 = vmatpush1.bf16.msra.mxu0 %v114
    %139 = vmatprep.subr.bf16.mxu0 0
    %140 = vmatpush1.bf16.msra.mxu0 0
    %141 = vmatprep.subr.bf16.mxu0 0
    %142 = vmatpush1.bf16.msra.mxu0 0
    %143 = vmatprep.subr.bf16.mxu0 0
    %144 = vmatpush1.bf16.msra.mxu0 0
    %145 = vmatprep.subr.bf16.mxu0 0
    %146 = vmatpush1.bf16.msra.mxu0 0
    %147 = vmatprep.subr.bf16.mxu0 0
    %148 = vmatpush1.bf16.msra.mxu0 0
    %149 = vmatprep.subr.bf16.mxu0 0
    %150 = vmatpush1.bf16.msra.mxu0 0
    %151 = vmatprep.subr.bf16.mxu0 0
    %152 = vmatpush1.bf16.msra.mxu0 0
    %153 = vmatprep.subr.bf16.mxu0 0
    %154 = vmatpush1.bf16.msra.mxu0 0
    %155 = vmatprep.mubr.bf16.mxu0 0
    %156 = vmatmul.mubr.bf16.gmra.mrb[0].mxu0 %v73
    %v157 = vpop.f32.mrb[0].mxu0
    %v158 = vadd.f32 %v67, %v157
    %v159 = vpop.f32.mrb[0].mxu0
    %v160 = vpop.f32.mrb[0].mxu0
    %v161 = vadd.f32 %v67, %v160
    %v162 = vpop.f32.mrb[0].mxu0
    %163 = vdwg.mxu0
    %164 = vst [vmem:[#allocation7] sm:$0xff] %v158
    %165 = vst [vmem:[#allocation7 + $0x8] sm:$0xff] %v161
    // Predicated region
    $region22: #{tpu_custom_call.1} parent=1 // pred_check
      _
    $region23: #{tpu_custom_call.1} parent=1 // pred_check_branch
      %167 = sbr.rel (0) target = $region25
    $region24: #{tpu_custom_call.1} parent=1 // pred_region
      %s169 = ssub.s32 256, 256
      %170 = vsyncadd [#allocation4], %s169
      %s171 = sshll.u32 [#allocation7], 4
      %s172 = int_to_ptr.vmem [resolvable:$true] %s171
      %177 = dma.vmem_to_hbm [thread:$0]  %s172, 256, %s3, [#allocation4], 128, 128, 8
    $region25: #{tpu_custom_call.1} parent=1 // pred_fallthru
      _
    // Predicated region
    $region26: #{tpu_custom_call.1} parent=1 // pred_check
      _
    $region27: #{tpu_custom_call.1} parent=1 // pred_check_branch
      %179 = sbr.rel (0) target = $region29
    $region28: #{tpu_custom_call.1} parent=1 // pred_region
      %180 = dma.done [#allocation4], 256
    $region29: #{tpu_custom_call.1} parent=1 // pred_fallthru
      _
    %181 = vsyncpa [#allocation3], 1
    %182 = vsyncpa [#allocation6], 1
    %183 = vsyncpa [#allocation4], 1

</llo_original>
